<compile_context>
chip_gen: v6e
topology: v6e:2x2x1
jax: 0.10.0
libtpu: 0.0.40
codegen_flags: <defaults>
</compile_context>

<pallas_src>
import functools

import jax
import jax.numpy as jnp
from jax import lax
from jax.experimental import pallas as pl
from jax.experimental.pallas import tpu as pltpu

LANE = 128


def self_attention_kernel(x_ref, wqkv_ref, o_ref, *, d_pad, scale):
    x = x_ref[...]                                                     # (S, d_in_p)

    # One fused projection: (S, d_in_p) @ (d_in_p, 3*d_out_p) on the MXU.
    qkv = jnp.dot(x, wqkv_ref[...], preferred_element_type=jnp.float32)

    # Static, 128-aligned lane slices of the fused result (no layout shuffles).
    q = qkv[:, :d_pad] * scale            # fold 1/sqrt(d_out) into q (O(S*d))
    k = qkv[:, d_pad:2 * d_pad]
    v = qkv[:, 2 * d_pad:3 * d_pad]

    # scores = q @ k^T expressed as a contraction over the shared last dim
    # (no explicit transpose / XLU vxpose).
    scores = lax.dot_general(
        q, k,
        dimension_numbers=(((1,), (1,)), ((), ())),
        preferred_element_type=jnp.float32,
    )                                                                  # (S, S)

    # Numerically stable softmax; reciprocal on the EUP (approx vrcp).
    m = jnp.max(scores, axis=-1, keepdims=True)
    p = jnp.exp(scores - m)
    attn = p * pl.reciprocal(jnp.sum(p, axis=-1, keepdims=True), approx=True)

    # (S, S) @ (S, d_out_p) -> lane-dense, unmasked full-width store.
    o_ref[...] = jnp.dot(attn, v, preferred_element_type=jnp.float32).astype(
        o_ref.dtype
    )


def self_attention(x, w_query, w_key, w_value):
    seq, d_in = x.shape
    d_out = w_query.shape[1]
    scale = 1.0 / (d_out ** 0.5)   # scale uses the *logical* d_out, not padded

    # Pad contraction (d_in) and feature (d_out) dims to lane-dense 128 multiples.
    d_in_p = ((d_in + LANE - 1) // LANE) * LANE
    d_out_p = ((d_out + LANE - 1) // LANE) * LANE

    def pad_w(w):
        return jnp.pad(w, ((0, d_in_p - d_in), (0, d_out_p - d_out)))

    # Fused, lane-dense QKV weight: (d_in_p, 3*d_out_p).
    w_qkv = jnp.concatenate([pad_w(w_query), pad_w(w_key), pad_w(w_value)], axis=1)
    x_p = jnp.pad(x, ((0, 0), (0, d_in_p - d_in)))

    kernel = functools.partial(self_attention_kernel, d_pad=d_out_p, scale=scale)

    # Whole arrays resident in VMEM, no grid (toy shape; tile for large S).
    out_p = pl.pallas_call(
        kernel,
        out_shape=jax.ShapeDtypeStruct((seq, d_out_p), x.dtype),
        in_specs=[
            pl.BlockSpec(memory_space=pltpu.MemorySpace.VMEM),
            pl.BlockSpec(memory_space=pltpu.MemorySpace.VMEM),
        ],
        out_specs=pl.BlockSpec(memory_space=pltpu.MemorySpace.VMEM),
    )(x_p, w_qkv)

    return out_p[:, :d_out]


def self_attention_ref(x, w_query, w_key, w_value):
    q = x @ w_query
    k = x @ w_key
    v = x @ w_value
    scores = q @ k.T
    weights = jax.nn.softmax(scores / (k.shape[-1] ** 0.5), axis=-1)
    return weights @ v


if __name__ == "__main__":
    seq, d_in, d_out = 8, 32, 32

    key = jax.random.PRNGKey(0)
    kx, kq, kk, kv = jax.random.split(key, 4)

    # torch.rand -> uniform [0, 1)
    x = jax.random.uniform(kx, (seq, d_in), dtype=jnp.float32)
    w_query = jax.random.uniform(kq, (d_in, d_out), dtype=jnp.float32)
    w_key = jax.random.uniform(kk, (d_in, d_out), dtype=jnp.float32)
    w_value = jax.random.uniform(kv, (d_in, d_out), dtype=jnp.float32)

    out = self_attention(x, w_query, w_key, w_value)
    jax.block_until_ready(out)

    ref = self_attention_ref(x, w_query, w_key, w_value)
    assert out.shape == (seq, d_out)
    # Tolerance slightly loosened vs 1e-4 because the softmax denominator uses
    # the approximate EUP reciprocal; all matmuls remain f32.
    assert jnp.allclose(out, ref, atol=2e-3, rtol=2e-3)

    print("KERNEL_OK")
</pallas_src>

<mosaic_0001>
module attributes {stable_mosaic.version = 11 : i64} {
  func.func @self_attention_kernel(%arg0: memref<8x128xf32, #tpu.memory_space<vmem>>, %arg1: memref<128x384xf32, #tpu.memory_space<vmem>>, %arg2: memref<8x128xf32, #tpu.memory_space<vmem>>) attributes {dimension_semantics = [], scalar_prefetch = 0 : i64, scratch_operands = 0 : i64, tpu.core_type = #tpu.core_type<tc>} {
    %c0 = arith.constant 0 : index
    %c0_0 = arith.constant 0 : index
    %0 = vector.load %arg0[%c0, %c0_0] : memref<8x128xf32, #tpu.memory_space<vmem>>, vector<8x128xf32>
    %c0_1 = arith.constant 0 : index
    %c0_2 = arith.constant 0 : index
    %1 = vector.load %arg1[%c0_1, %c0_2] : memref<128x384xf32, #tpu.memory_space<vmem>>, vector<128x384xf32>
    %cst = arith.constant dense<0.000000e+00> : vector<8x384xf32>
    %2 = tpu.matmul %0, %1, %cst {dimension_numbers = #tpu.dot_dimension_numbers<[1], [0], [0], [1], [0, 0, 1, 1], [], []>} : vector<8x128xf32>, vector<128x384xf32>, vector<8x384xf32> -> vector<8x384xf32>
    %3 = vector.extract_strided_slice %2 {offsets = [0, 0], sizes = [8, 128], strides = [1, 1]} : vector<8x384xf32> to vector<8x128xf32>
    %cst_3 = arith.constant 0.176776692 : f32
    %4 = vector.broadcast %cst_3 : f32 to vector<8x128xf32>
    %5 = arith.mulf %3, %4 : vector<8x128xf32>
    %6 = vector.extract_strided_slice %2 {offsets = [0, 128], sizes = [8, 128], strides = [1, 1]} : vector<8x384xf32> to vector<8x128xf32>
    %7 = vector.extract_strided_slice %2 {offsets = [0, 256], sizes = [8, 128], strides = [1, 1]} : vector<8x384xf32> to vector<8x128xf32>
    %cst_4 = arith.constant dense<0.000000e+00> : vector<8x8xf32>
    %8 = tpu.matmul %5, %6, %cst_4 {dimension_numbers = #tpu.dot_dimension_numbers<[1], [1], [0], [0], [0, 0, 1, 0], [], []>} : vector<8x128xf32>, vector<8x128xf32>, vector<8x8xf32> -> vector<8x8xf32>
    %cst_5 = arith.constant dense<0xFF800000> : vector<8xf32>
    %9 = vector.multi_reduction <maximumf>, %8, %cst_5 [1] : vector<8x8xf32> to vector<8xf32>
    %10 = vector.shape_cast %9 : vector<8xf32> to vector<8x1xf32>
    %11 = vector.broadcast %10 : vector<8x1xf32> to vector<8x8xf32>
    %12 = arith.subf %8, %11 : vector<8x8xf32>
    %13 = math.exp %12 : vector<8x8xf32>
    %cst_6 = arith.constant dense<0.000000e+00> : vector<8xf32>
    %14 = vector.multi_reduction <add>, %13, %cst_6 [1] : vector<8x8xf32> to vector<8xf32>
    %15 = vector.shape_cast %14 : vector<8xf32> to vector<8x1xf32>
    %16 = tpu.reciprocal %15 {approx = true} : vector<8x1xf32> -> vector<8x1xf32>
    %17 = vector.broadcast %16 : vector<8x1xf32> to vector<8x8xf32>
    %18 = arith.mulf %13, %17 : vector<8x8xf32>
    %cst_7 = arith.constant dense<0.000000e+00> : vector<8x128xf32>
    %19 = tpu.matmul %18, %7, %cst_7 {dimension_numbers = #tpu.dot_dimension_numbers<[1], [0], [0], [1], [0, 0, 1, 1], [], []>} : vector<8x8xf32>, vector<8x128xf32>, vector<8x128xf32> -> vector<8x128xf32>
    %c0_8 = arith.constant 0 : index
    %c0_9 = arith.constant 0 : index
    %20 = vector.load %arg2[%c0_8, %c0_9] : memref<8x128xf32, #tpu.memory_space<vmem>>, vector<8x128xf32>
    tpu.vector_store %arg2[%c0_8, %c0_9], %19 {strides = array<i32>} : memref<8x128xf32, #tpu.memory_space<vmem>>, vector<8x128xf32>,
    return
  }
}

</mosaic_0001>

<llo_original>
// kernel: tpu_custom_call.1
$region0: #{tpu_custom_call.1}
  #allocation0 [shape = 'u32[]', space=smem, size = 0x4, offset = 0x4, fixed_abs, tag = 'smem constant byte address 0x4 - core index']
  #allocation1 [shape = 'u32[144,128]{1,0:T(1,128)}', space=vmem, size = 0x12000, scoped, tag = 'internal scratch']
  %s0 = inlined_call_operand.hbm [shape: f32[8,128], index: 0, kind: input, shape index: {}]
  %s1 = inlined_call_operand.hbm [shape: f32[128,384], index: 1, kind: input, shape index: {}]
  %s2 = inlined_call_operand.hbm [shape: f32[8,128], index: 2, kind: output, shape index: {}]
  %s3 = sld [smem:[#allocation0]]
  $region26: #{tpu_custom_call.1} parent=0
    _
  %s5 = ssub.s32 1, %s3
  %s6 = scalar_select 0, %s5, %s3
  $region1: #{tpu_custom_call.1} parent=0
    #allocation2 [shape = 'u8[4096]{0}', space=vmem, size = 0x1000, scoped, tag = 'input window, operand 0, single buffered']
    #allocation3 [shape = 's32[1]{0}', space=sflag, size = 0x4, scoped, tag = 'scoped memory for tpu_custom_call.1']
    #allocation4 [shape = 's32[1]{0}', space=sflag, size = 0x4, scoped, tag = 'scoped memory for tpu_custom_call.1']
    #allocation5 [shape = 'u8[196608]{0}', space=vmem, size = 0x30000, scoped, tag = 'input window, operand 1, single buffered']
    #allocation6 [shape = 's32[1]{0}', space=sflag, size = 0x4, scoped, tag = 'scoped memory for tpu_custom_call.1']
    #allocation7 [shape = 'u8[4096]{0}', space=vmem, size = 0x1000, scoped, tag = 'output window, operand 0, single buffered']
    %7 = vsyncpa [#allocation3], 0
    %8 = vsyncpa [#allocation6], 0
    %9 = vsyncpa [#allocation4], 0
    // Predicated region
    $region2: #{tpu_custom_call.1} parent=1 // pred_check
      _
    $region3: #{tpu_custom_call.1} parent=1 // pred_check_branch
      %11 = sbr.rel (0) target = $region5
    $region4: #{tpu_custom_call.1} parent=1 // pred_region
      %s13 = ssub.s32 128, 128
      %14 = vsyncadd [#allocation3], %s13
      %s16 = sshll.u32 [#allocation2], 4
      %s17 = int_to_ptr.vmem [resolvable:$true] %s16
      %19 = dma.hbm_to_vmem [thread:$0]  %s0, 128, %s17, [#allocation3]
    $region5: #{tpu_custom_call.1} parent=1 // pred_fallthru
      _
    // Predicated region
    $region6: #{tpu_custom_call.1} parent=1 // pred_check
      _
    $region7: #{tpu_custom_call.1} parent=1 // pred_check_branch
      %21 = sbr.rel (0) target = $region9
    $region8: #{tpu_custom_call.1} parent=1 // pred_region
      %s23 = ssub.s32 6144, 6144
      %24 = vsyncadd [#allocation6], %s23
      %s25 = sshll.u32 [#allocation5], 4
      %s26 = int_to_ptr.vmem [resolvable:$true] %s25
      %31 = dma.hbm_to_vmem [thread:$0]  %s1, 6144, %s26, [#allocation6], 384, 384, 24
    $region9: #{tpu_custom_call.1} parent=1 // pred_fallthru
      _
    // Predicated region
    $region10: #{tpu_custom_call.1} parent=1 // pred_check
      _
    $region11: #{tpu_custom_call.1} parent=1 // pred_check_branch
      %33 = sbr.rel (0) target = $region13
    $region12: #{tpu_custom_call.1} parent=1 // pred_region
      %34 = dma.done [#allocation3], 128
    $region13: #{tpu_custom_call.1} parent=1 // pred_fallthru
      _
    // Predicated region
    $region14: #{tpu_custom_call.1} parent=1 // pred_check
      _
    $region15: #{tpu_custom_call.1} parent=1 // pred_check_branch
      %36 = sbr.rel (0) target = $region17
    $region16: #{tpu_custom_call.1} parent=1 // pred_region
      %37 = dma.done [#allocation6], 6144
    $region17: #{tpu_custom_call.1} parent=1 // pred_fallthru
      _
    %v38 = vld [vmem:[#allocation2] sm:$0xff]
    %v39 = vld [vmem:[#allocation5] sm:$0xff]
    %v40 = vld [vmem:[#allocation5 + $0x8] sm:$0xff]
    %v41 = vld [vmem:[#allocation5 + $0x10] sm:$0xff]
    %v42 = vld [vmem:[#allocation5 + $0x18] sm:$0xff]
    %v43 = vld [vmem:[#allocation5 + $0x20] sm:$0xff]
    %v44 = vld [vmem:[#allocation5 + $0x28] sm:$0xff]
    %v45 = vld [vmem:[#allocation5 + $0x30] sm:$0xff]
    %v46 = vld [vmem:[#allocation5 + $0x38] sm:$0xff]
    %v47 = vld [vmem:[#allocation5 + $0x40] sm:$0xff]
    %v48 = vld [vmem:[#allocation5 + $0x48] sm:$0xff]
    %v49 = vld [vmem:[#allocation5 + $0x50] sm:$0xff]
    %v50 = vld [vmem:[#allocation5 + $0x58] sm:$0xff]
    %v51 = vld [vmem:[#allocation5 + $0x60] sm:$0xff]
    %v52 = vld [vmem:[#allocation5 + $0x68] sm:$0xff]
    %v53 = vld [vmem:[#allocation5 + $0x70] sm:$0xff]
    %v54 = vld [vmem:[#allocation5 + $0x78] sm:$0xff]
    %v55 = vld [vmem:[#allocation5 + $0x80] sm:$0xff]
    %v56 = vld [vmem:[#allocation5 + $0x88] sm:$0xff]
    %v57 = vld [vmem:[#allocation5 + $0x90] sm:$0xff]
    %v58 = vld [vmem:[#allocation5 + $0x98] sm:$0xff]
    %v59 = vld [vmem:[#allocation5 + $0xa0] sm:$0xff]
    %v60 = vld [vmem:[#allocation5 + $0xa8] sm:$0xff]
    %v61 = vld [vmem:[#allocation5 + $0xb0] sm:$0xff]
    %v62 = vld [vmem:[#allocation5 + $0xb8] sm:$0xff]
    %v63 = vld [vmem:[#allocation5 + $0xc0] sm:$0xff]
    %v64 = vld [vmem:[#allocation5 + $0xc8] sm:$0xff]
    %v65 = vld [vmem:[#allocation5 + $0xd0] sm:$0xff]
    %v66 = vld [vmem:[#allocation5 + $0xd8] sm:$0xff]
    %v67 = vld [vmem:[#allocation5 + $0xe0] sm:$0xff]
    %v68 = vld [vmem:[#allocation5 + $0xe8] sm:$0xff]
    %v69 = vld [vmem:[#allocation5 + $0xf0] sm:$0xff]
    %v70 = vld [vmem:[#allocation5 + $0xf8] sm:$0xff]
    %v71 = vld [vmem:[#allocation5 + $0x100] sm:$0xff]
    %v72 = vld [vmem:[#allocation5 + $0x108] sm:$0xff]
    %v73 = vld [vmem:[#allocation5 + $0x110] sm:$0xff]
    %v74 = vld [vmem:[#allocation5 + $0x118] sm:$0xff]
    %v75 = vld [vmem:[#allocation5 + $0x120] sm:$0xff]
    %v76 = vld [vmem:[#allocation5 + $0x128] sm:$0xff]
    %v77 = vld [vmem:[#allocation5 + $0x130] sm:$0xff]
    %v78 = vld [vmem:[#allocation5 + $0x138] sm:$0xff]
    %v79 = vld [vmem:[#allocation5 + $0x140] sm:$0xff]
    %v80 = vld [vmem:[#allocation5 + $0x148] sm:$0xff]
    %v81 = vld [vmem:[#allocation5 + $0x150] sm:$0xff]
    %v82 = vld [vmem:[#allocation5 + $0x158] sm:$0xff]
    %v83 = vld [vmem:[#allocation5 + $0x160] sm:$0xff]
    %v84 = vld [vmem:[#allocation5 + $0x168] sm:$0xff]
    %v85 = vld [vmem:[#allocation5 + $0x170] sm:$0xff]
    %v86 = vld [vmem:[#allocation5 + $0x178] sm:$0xff]
    %87 = vmatprep.subr.mxu0 %v85
    %88 = vmatpush1.msra.mxu0 %v84
    %89 = vmatprep.subr.mxu0 %v82
    %90 = vmatpush1.msra.mxu0 %v81
    %91 = vmatprep.subr.mxu0 %v79
    %92 = vmatpush1.msra.mxu0 %v78
    %93 = vmatprep.subr.mxu0 %v76
    %94 = vmatpush1.msra.mxu0 %v75
    %95 = vmatprep.subr.mxu0 %v73
    %96 = vmatpush1.msra.mxu0 %v72
    %97 = vmatprep.subr.mxu0 %v70
    %98 = vmatpush1.msra.mxu0 %v69
    %99 = vmatprep.subr.mxu0 %v67
    %100 = vmatpush1.msra.mxu0 %v66
    %101 = vmatprep.subr.mxu0 %v64
    %102 = vmatpush1.msra.mxu0 %v63
    %103 = vmatprep.subr.mxu0 %v61
    %104 = vmatpush1.msra.mxu0 %v60
    %105 = vmatprep.subr.mxu0 %v58
    %106 = vmatpush1.msra.mxu0 %v57
    %107 = vmatprep.subr.mxu0 %v55
    %108 = vmatpush1.msra.mxu0 %v54
    %109 = vmatprep.subr.mxu0 %v52
    %110 = vmatpush1.msra.mxu0 %v51
    %111 = vmatprep.subr.mxu0 %v49
    %112 = vmatpush1.msra.mxu0 %v48
    %113 = vmatprep.subr.mxu0 %v46
    %114 = vmatpush1.msra.mxu0 %v45
    %115 = vmatprep.subr.mxu0 %v43
    %116 = vmatpush1.msra.mxu0 %v42
    %117 = vmatprep.subr.mxu0 %v40
    %118 = vmatpush1.msra.mxu0 %v39
    %119 = vmatprep.subr.mxu0 0.0
    %120 = vmatpush2.msra.mxu0 0.0
    %121 = vmatprep.subr.mxu0 0.0
    %122 = vmatpush2.msra.mxu0 0.0
    %123 = vmatprep.subr.mxu0 0.0
    %124 = vmatpush2.msra.mxu0 0.0
    %125 = vmatprep.subr.mxu0 0.0
    %126 = vmatpush2.msra.mxu0 0.0
    %127 = vmatprep.subr.mxu0 0.0
    %128 = vmatpush2.msra.mxu0 0.0
    %129 = vmatprep.subr.mxu0 0.0
    %130 = vmatpush2.msra.mxu0 0.0
    %131 = vmatprep.subr.mxu0 0.0
    %132 = vmatpush2.msra.mxu0 0.0
    %133 = vmatprep.subr.mxu0 0.0
    %134 = vmatpush2.msra.mxu0 0.0
    %135 = vmatprep.subr.mxu0 0.0
    %136 = vmatpush2.msra.mxu0 0.0
    %137 = vmatprep.subr.mxu0 0.0
    %138 = vmatpush2.msra.mxu0 0.0
    %139 = vmatprep.subr.mxu0 0.0
    %140 = vmatpush2.msra.mxu0 0.0
    %141 = vmatprep.subr.mxu0 0.0
    %142 = vmatpush2.msra.mxu0 0.0
    %143 = vmatprep.subr.mxu0 0.0
    %144 = vmatpush2.msra.mxu0 0.0
    %145 = vmatprep.subr.mxu0 0.0
    %146 = vmatpush2.msra.mxu0 0.0
    %147 = vmatprep.subr.mxu0 0.0
    %148 = vmatpush2.msra.mxu0 0.0
    %149 = vmatprep.subr.mxu0 0.0
    %150 = vmatpush2.msra.mxu0 0.0
    %151 = vmatprep.mubr.f32.mxu0 0.0
    %152 = vmatmul.mubr.f32.gmra.mxu0 %v38
    %v153 = vpop.f32.mrf.mxu0
    %v154 = vadd.f32 0.0, %v153
    %v155 = vpop.f32.mrf.mxu0
    %v156 = vadd.f32 0.0, %v155
    %157 = vdwg.mxu0
    %158 = vmatprep.subr.mxu0 0.0
    %159 = vmatpush1.msra.mxu0 %v86
    %160 = vmatprep.subr.mxu0 0.0
    %161 = vmatpush1.msra.mxu0 %v83
    %162 = vmatprep.subr.mxu0 0.0
    %163 = vmatpush1.msra.mxu0 %v80
    %164 = vmatprep.subr.mxu0 0.0
    %165 = vmatpush1.msra.mxu0 %v77
    %166 = vmatprep.subr.mxu0 0.0
    %167 = vmatpush1.msra.mxu0 %v74
    %168 = vmatprep.subr.mxu0 0.0
    %169 = vmatpush1.msra.mxu0 %v71
    %170 = vmatprep.subr.mxu0 0.0
    %171 = vmatpush1.msra.mxu0 %v68
    %172 = vmatprep.subr.mxu0 0.0
    %173 = vmatpush1.msra.mxu0 %v65
    %174 = vmatprep.subr.mxu0 0.0
    %175 = vmatpush1.msra.mxu0 %v62
    %176 = vmatprep.subr.mxu0 0.0
    %177 = vmatpush1.msra.mxu0 %v59
    %178 = vmatprep.subr.mxu0 0.0
    %179 = vmatpush1.msra.mxu0 %v56
    %180 = vmatprep.subr.mxu0 0.0
    %181 = vmatpush1.msra.mxu0 %v53
    %182 = vmatprep.subr.mxu0 0.0
    %183 = vmatpush1.msra.mxu0 %v50
    %184 = vmatprep.subr.mxu0 0.0
    %185 = vmatpush1.msra.mxu0 %v47
    %186 = vmatprep.subr.mxu0 0.0
    %187 = vmatpush1.msra.mxu0 %v44
    %188 = vmatprep.subr.mxu0 0.0
    %189 = vmatpush1.msra.mxu0 %v41
    %190 = vmatprep.subr.mxu0 0.0
    %191 = vmatpush2.msra.mxu0 0.0
    %192 = vmatprep.subr.mxu0 0.0
    %193 = vmatpush2.msra.mxu0 0.0
    %194 = vmatprep.subr.mxu0 0.0
    %195 = vmatpush2.msra.mxu0 0.0
    %196 = vmatprep.subr.mxu0 0.0
    %197 = vmatpush2.msra.mxu0 0.0
    %198 = vmatprep.subr.mxu0 0.0
    %199 = vmatpush2.msra.mxu0 0.0
    %200 = vmatprep.subr.mxu0 0.0
    %201 = vmatpush2.msra.mxu0 0.0
    %202 = vmatprep.subr.mxu0 0.0
    %203 = vmatpush2.msra.mxu0 0.0
    %204 = vmatprep.subr.mxu0 0.0
    %205 = vmatpush2.msra.mxu0 0.0
    %206 = vmatprep.subr.mxu0 0.0
    %207 = vmatpush2.msra.mxu0 0.0
    %208 = vmatprep.subr.mxu0 0.0
    %209 = vmatpush2.msra.mxu0 0.0
    %210 = vmatprep.subr.mxu0 0.0
    %211 = vmatpush2.msra.mxu0 0.0
    %212 = vmatprep.subr.mxu0 0.0
    %213 = vmatpush2.msra.mxu0 0.0
    %214 = vmatprep.subr.mxu0 0.0
    %215 = vmatpush2.msra.mxu0 0.0
    %216 = vmatprep.subr.mxu0 0.0
    %217 = vmatpush2.msra.mxu0 0.0
    %218 = vmatprep.subr.mxu0 0.0
    %219 = vmatpush2.msra.mxu0 0.0
    %220 = vmatprep.subr.mxu0 0.0
    %221 = vmatpush2.msra.mxu0 0.0
    %222 = vmatprep.mubr.f32.mxu0 0.0
    %223 = vmatmul.mubr.f32.gmra.mxu0 %v38
    %v224 = vpop.f32.mrf.mxu0
    %v225 = vadd.f32 0.0, %v224
    %v226 = vpop.f32.mrf.mxu0
    %227 = vdwg.mxu0
    %v228 = vmul.f32 %v154, 0.17677669
    %229 = vmatprep.subr.mxu0 0.0
    %230 = vmatpush1.xpose.msra.mxu0 0.0
    %231 = vmatprep.subr.mxu0 0.0
    %232 = vmatpush1.xpose.msra.mxu0 0.0
    %233 = vmatprep.subr.mxu0 0.0
    %234 = vmatpush1.xpose.msra.mxu0 0.0
    %235 = vmatprep.subr.mxu0 0.0
    %236 = vmatpush1.xpose.msra.mxu0 0.0
    %237 = vmatprep.subr.mxu0 0.0
    %238 = vmatpush1.xpose.msra.mxu0 0.0
    %239 = vmatprep.subr.mxu0 0.0
    %240 = vmatpush1.xpose.msra.mxu0 0.0
    %241 = vmatprep.subr.mxu0 0.0
    %242 = vmatpush1.xpose.msra.mxu0 0.0
    %243 = vmatprep.subr.mxu0 0.0
    %244 = vmatpush1.xpose.msra.mxu0 0.0
    %245 = vmatprep.subr.mxu0 0.0
    %246 = vmatpush1.xpose.msra.mxu0 0.0
    %247 = vmatprep.subr.mxu0 0.0
    %248 = vmatpush1.xpose.msra.mxu0 0.0
    %249 = vmatprep.subr.mxu0 0.0
    %250 = vmatpush1.xpose.msra.mxu0 0.0
    %251 = vmatprep.subr.mxu0 0.0
    %252 = vmatpush1.xpose.msra.mxu0 0.0
    %253 = vmatprep.subr.mxu0 0.0
    %254 = vmatpush1.xpose.msra.mxu0 0.0
    %255 = vmatprep.subr.mxu0 0.0
    %256 = vmatpush1.xpose.msra.mxu0 0.0
    %257 = vmatprep.subr.mxu0 0.0
    %258 = vmatpush1.xpose.msra.mxu0 0.0
    %259 = vmatprep.subr.mxu0 0.0
    %260 = vmatpush1.xpose.msra.mxu0 %v156
    %261 = vmatprep.subr.mxu0 0.0
    %262 = vmatpush2.xpose.msra.mxu0 0.0
    %263 = vmatprep.subr.mxu0 0.0
    %264 = vmatpush2.xpose.msra.mxu0 0.0
    %265 = vmatprep.subr.mxu0 0.0
    %266 = vmatpush2.xpose.msra.mxu0 0.0
    %267 = vmatprep.subr.mxu0 0.0
    %268 = vmatpush2.xpose.msra.mxu0 0.0
    %269 = vmatprep.subr.mxu0 0.0
    %270 = vmatpush2.xpose.msra.mxu0 0.0
    %271 = vmatprep.subr.mxu0 0.0
    %272 = vmatpush2.xpose.msra.mxu0 0.0
    %273 = vmatprep.subr.mxu0 0.0
    %274 = vmatpush2.xpose.msra.mxu0 0.0
    %275 = vmatprep.subr.mxu0 0.0
    %276 = vmatpush2.xpose.msra.mxu0 0.0
    %277 = vmatprep.subr.mxu0 0.0
    %278 = vmatpush2.xpose.msra.mxu0 0.0
    %279 = vmatprep.subr.mxu0 0.0
    %280 = vmatpush2.xpose.msra.mxu0 0.0
    %281 = vmatprep.subr.mxu0 0.0
    %282 = vmatpush2.xpose.msra.mxu0 0.0
    %283 = vmatprep.subr.mxu0 0.0
    %284 = vmatpush2.xpose.msra.mxu0 0.0
    %285 = vmatprep.subr.mxu0 0.0
    %286 = vmatpush2.xpose.msra.mxu0 0.0
    %287 = vmatprep.subr.mxu0 0.0
    %288 = vmatpush2.xpose.msra.mxu0 0.0
    %289 = vmatprep.subr.mxu0 0.0
    %290 = vmatpush2.xpose.msra.mxu0 0.0
    %291 = vmatprep.subr.mxu0 0.0
    %292 = vmatpush2.xpose.msra.mxu0 0.0
    %293 = vmatprep.mubr.f32.mxu0 0.0
    %294 = vmatmul.mubr.f32.gmra.mxu0 %v228
    %v295 = vpop.f32.mrf.mxu0
    %v296 = vadd.f32 0.0, %v295
    %v297 = vpop.f32.mrf.mxu0
    %298 = vdwg.mxu0
    %vm299 = vcmask 64512
    %v300 = vsel %vm299, %v296, -inf
    %301 = vmax.xlane.f32.xlu0 %v300
    %v302 = vpop.xlane.xlu0 %301
    %v303 = vsub.f32 %v296, %v302
    %v304 = vmul.f32 %v303, 1.442695
    %v305 = vpow.pop %v304
    %v306 = vsel %vm299, %v305, 0.0
    %307 = vadd.xlane.f32.xlu0 %v306
    %v308 = vpop.xlane.xlu0 %307
    %v309 = vrcp.pop %v308
    %v310 = vmul.f32 %v305, %v309
    %v312 = vsel %vm299, %v310, 0
    %314 = vmatprep.subr.mxu0 0.0
    %315 = vmatpush1.msra.mxu0 0.0
    %316 = vmatprep.subr.mxu0 0.0
    %317 = vmatpush1.msra.mxu0 0.0
    %318 = vmatprep.subr.mxu0 0.0
    %319 = vmatpush1.msra.mxu0 0.0
    %320 = vmatprep.subr.mxu0 0.0
    %321 = vmatpush1.msra.mxu0 0.0
    %322 = vmatprep.subr.mxu0 0.0
    %323 = vmatpush1.msra.mxu0 0.0
    %324 = vmatprep.subr.mxu0 0.0
    %325 = vmatpush1.msra.mxu0 0.0
    %326 = vmatprep.subr.mxu0 0.0
    %327 = vmatpush1.msra.mxu0 0.0
    %328 = vmatprep.subr.mxu0 0.0
    %329 = vmatpush1.msra.mxu0 0.0
    %330 = vmatprep.subr.mxu0 0.0
    %331 = vmatpush1.msra.mxu0 0.0
    %332 = vmatprep.subr.mxu0 0.0
    %333 = vmatpush1.msra.mxu0 0.0
    %334 = vmatprep.subr.mxu0 0.0
    %335 = vmatpush1.msra.mxu0 0.0
    %336 = vmatprep.subr.mxu0 0.0
    %337 = vmatpush1.msra.mxu0 0.0
    %338 = vmatprep.subr.mxu0 0.0
    %339 = vmatpush1.msra.mxu0 0.0
    %340 = vmatprep.subr.mxu0 0.0
    %341 = vmatpush1.msra.mxu0 0.0
    %342 = vmatprep.subr.mxu0 0.0
    %343 = vmatpush1.msra.mxu0 0.0
    %344 = vmatprep.subr.mxu0 0.0
    %345 = vmatpush1.msra.mxu0 %v225
    %346 = vmatprep.subr.mxu0 0.0
    %347 = vmatpush2.msra.mxu0 0.0
    %348 = vmatprep.subr.mxu0 0.0
    %349 = vmatpush2.msra.mxu0 0.0
    %350 = vmatprep.subr.mxu0 0.0
    %351 = vmatpush2.msra.mxu0 0.0
    %352 = vmatprep.subr.mxu0 0.0
    %353 = vmatpush2.msra.mxu0 0.0
    %354 = vmatprep.subr.mxu0 0.0
    %355 = vmatpush2.msra.mxu0 0.0
    %356 = vmatprep.subr.mxu0 0.0
    %357 = vmatpush2.msra.mxu0 0.0
    %358 = vmatprep.subr.mxu0 0.0
    %359 = vmatpush2.msra.mxu0 0.0
    %360 = vmatprep.subr.mxu0 0.0
    %361 = vmatpush2.msra.mxu0 0.0
    %362 = vmatprep.subr.mxu0 0.0
    %363 = vmatpush2.msra.mxu0 0.0
    %364 = vmatprep.subr.mxu0 0.0
    %365 = vmatpush2.msra.mxu0 0.0
    %366 = vmatprep.subr.mxu0 0.0
    %367 = vmatpush2.msra.mxu0 0.0
    %368 = vmatprep.subr.mxu0 0.0
    %369 = vmatpush2.msra.mxu0 0.0
    %370 = vmatprep.subr.mxu0 0.0
    %371 = vmatpush2.msra.mxu0 0.0
    %372 = vmatprep.subr.mxu0 0.0
    %373 = vmatpush2.msra.mxu0 0.0
    %374 = vmatprep.subr.mxu0 0.0
    %375 = vmatpush2.msra.mxu0 0.0
    %376 = vmatprep.subr.mxu0 0.0
    %377 = vmatpush2.msra.mxu0 0.0
    %378 = vmatprep.mubr.f32.mxu0 0.0
    %379 = vmatmul.mubr.f32.gmra.mxu0 %v312
    %v380 = vpop.f32.mrf.mxu0
    %v381 = vadd.f32 0.0, %v380
    %v382 = vpop.f32.mrf.mxu0
    %383 = vdwg.mxu0
    %384 = vst [vmem:[#allocation7] sm:$0xff] %v381
    // Predicated region
    $region18: #{tpu_custom_call.1} parent=1 // pred_check
      _
    $region19: #{tpu_custom_call.1} parent=1 // pred_check_branch
      %386 = sbr.rel (0) target = $region21
    $region20: #{tpu_custom_call.1} parent=1 // pred_region
      %s388 = ssub.s32 128, 128
      %389 = vsyncadd [#allocation4], %s388
      %s391 = sshll.u32 [#allocation7], 4
      %s392 = int_to_ptr.vmem [resolvable:$true] %s391
      %394 = dma.vmem_to_hbm [thread:$0]  %s392, 128, %s2, [#allocation4]
    $region21: #{tpu_custom_call.1} parent=1 // pred_fallthru
      _
    // Predicated region
    $region22: #{tpu_custom_call.1} parent=1 // pred_check
      _
    $region23: #{tpu_custom_call.1} parent=1 // pred_check_branch
      %396 = sbr.rel (0) target = $region25
    $region24: #{tpu_custom_call.1} parent=1 // pred_region
      %397 = dma.done [#allocation4], 128
    $region25: #{tpu_custom_call.1} parent=1 // pred_fallthru
      _
    %398 = vsyncpa [#allocation3], 1
    %399 = vsyncpa [#allocation6], 1
    %400 = vsyncpa [#allocation4], 1

</llo_original>
